<compile_context>
chip_gen: v7x
topology: tpu7x:2x2x1
jax: 0.10.0
libtpu: 0.0.40
codegen_flags: <defaults>
</compile_context>

<pallas_src>
import functools

import jax
import jax.numpy as jnp
from jax.experimental import pallas as pl
from jax.experimental.pallas import tpu as pltpu


def _round_up(n, m):
    return ((n + m - 1) // m) * m


def _const_spec(shape):
    """Full-array block whose index never changes across the grid.

    Pallas only re-issues the DMA when the block index changes, so these
    weight blocks are fetched once for the whole grid."""
    nd = len(shape)
    return pl.BlockSpec(shape, lambda *_, _nd=nd: (0,) * _nd)


# --------------------------------------------------------------------------
# Stage 1: lin1 + ReLU, tiled over (batch, L-tiles), channels-first bf16 out.
# --------------------------------------------------------------------------
def _lin1_kernel(x_ref, w1_ref, b1_ref, out_ref, *, seq_len):
    tl = x_ref.shape[1]
    xt = x_ref[0].astype(jnp.bfloat16)                       # (TL, 1024)
    h = jnp.dot(xt, w1_ref[...], preferred_element_type=jnp.float32)
    h = jnp.maximum(h + b1_ref[...], 0.0)                    # (TL, 64) f32
    if seq_len % tl != 0:
        # Rows past the true sequence end must be exactly zero so that the
        # convolutions in stage 2 see torch's zero padding.
        row = jax.lax.broadcasted_iota(jnp.int32, h.shape, 0)
        h = jnp.where(pl.program_id(1) * tl + row < seq_len, h, 0.0)
    out_ref[0] = h.T.astype(jnp.bfloat16)                    # (64, TL) bf16


# --------------------------------------------------------------------------
# Stage 2: conv1+BN1+conv2+BN2+lin2/3/4+sigmoid, channels-first per batch row.
# --------------------------------------------------------------------------
def _tail_kernel(h_ref,
                 wc1_ref, cb1_ref, s1_ref, t1_ref,
                 wc2_ref, cb2_ref, s2_ref, t2_ref,
                 w2_ref, b2_ref, w3t_ref, b3_ref, w4c_ref, b4_ref,
                 out_ref, *, seq_len):
    lp = h_ref.shape[2]
    h = h_ref[0]                                             # (64, Lp) bf16

    def shift_cols(y, s):
        # z[:, j] = y[:, j - s] if 0 <= j - s < Lp else 0 (zero-padded shift
        # along the lane axis of the small Cout-wide conv output).
        if s == 0:
            return y
        c = y.shape[0]
        z = jnp.zeros((c, abs(s)), y.dtype)
        if s > 0:
            return jnp.concatenate([z, y[:, :lp - s]], axis=1)
        return jnp.concatenate([y[:, -s:], z], axis=1)

    def conv_cf(a, w_ref, b_col):
        # a: (Cin, Lp) bf16, w_ref: (K, Cout, Cin) bf16, b_col: (Cout, 1) f32.
        k = w_ref.shape[0]
        pad = k // 2
        cout = w_ref.shape[1]
        acc = jnp.zeros((cout, lp), jnp.float32)
        for t in range(k):                                   # static taps
            y = jnp.dot(w_ref[t], a, preferred_element_type=jnp.float32)
            acc = acc + shift_cols(y, pad - t)
        return acc + b_col

    # conv1 (k=7, pad=3) + relu ; dr1 == identity (eval) ; bc1 folded.
    a1 = jnp.maximum(conv_cf(h, wc1_ref, cb1_ref[...]), 0.0)            # (32, Lp)
    a1 = a1 * s1_ref[...] + t1_ref[...]
    if lp != seq_len:
        # Zero the padded tail so conv2 sees torch's zero padding at L.
        col = jax.lax.broadcasted_iota(jnp.int32, a1.shape, 1)
        a1 = jnp.where(col < seq_len, a1, 0.0)

    # conv2 (k=5, pad=2) + relu ; dr2 == identity (eval) ; bc2 folded.
    a2 = jnp.maximum(conv_cf(a1.astype(jnp.bfloat16), wc2_ref, cb2_ref[...]),
                     0.0)                                                # (32, Lp)
    a2 = a2 * s2_ref[...] + t2_ref[...]

    # lin2 (32 -> 16) + relu on the MXU: (16, 32) @ (32, Lp).
    z2 = jnp.maximum(
        jnp.dot(w2_ref[...], a2.astype(jnp.bfloat16),
                preferred_element_type=jnp.float32) + b2_ref[...], 0.0)  # (16, Lp)

    # lin3 (16 -> 4) + relu on the VPU/XLU: broadcast-multiply + sublane sum.
    w3t = w3t_ref[...]                                       # (16, 4) f32
    rows = [jnp.sum(w3t[:, c:c + 1] * z2, axis=0, keepdims=True)
            for c in range(4)]                               # 4 x (1, Lp)
    z3 = jnp.maximum(jnp.concatenate(rows, axis=0) + b3_ref[...], 0.0)   # (4, Lp)

    # lin4 (4 -> 1) + sigmoid, lane-dense store.
    logit = jnp.sum(w4c_ref[...] * z3, axis=0, keepdims=True) + b4_ref[...]
    out_ref[0] = jax.nn.sigmoid(logit)                       # (1, Lp)


# --------------------------------------------------------------------------
# Wrapper
# --------------------------------------------------------------------------
def seqcore_forward(x, params, *, tile_l_max=1024):
    """x: (B, L, 1024) float32 -> (B, L, 1) float32."""
    (w1, b1, wc1, cb1, s1, t1, wc2, cb2, s2, t2,
     w2, b2, w3t, b3, w4c, b4) = params
    B, L, D = x.shape
    assert D == 1024

    # L tile: 8-aligned; capped so the double-buffered x stream stays well
    # under v7x's 64 MiB VMEM (2 * 1024 rows * 4 KiB = 8 MiB).
    tl = min(tile_l_max, _round_up(L, 8))
    nt = pl.cdiv(L, tl)
    lp = nt * tl

    # MXU operands in bf16 (f32 accumulation); element-wise math stays f32.
    w1_bf = w1.astype(jnp.bfloat16)
    wc1_bf = wc1.astype(jnp.bfloat16)
    wc2_bf = wc2.astype(jnp.bfloat16)
    w2_bf = w2.astype(jnp.bfloat16)

    # ---- Stage 1: lin1 + relu, channels-first bf16 intermediate -----------
    h1 = pl.pallas_call(
        functools.partial(_lin1_kernel, seq_len=L),
        out_shape=jax.ShapeDtypeStruct((B, 64, lp), jnp.bfloat16),
        grid_spec=pltpu.PrefetchScalarGridSpec(
            num_scalar_prefetch=0,
            grid=(B, nt),
            in_specs=[
                pl.BlockSpec((1, tl, 1024), lambda bi, ti: (bi, ti, 0)),
                _const_spec((1024, 64)),
                _const_spec((1, 64)),
            ],
            out_specs=pl.BlockSpec((1, 64, tl), lambda bi, ti: (bi, 0, ti))),
        compiler_params=pltpu.CompilerParams(
            dimension_semantics=("parallel", "parallel"),
            vmem_limit_bytes=48 * 1024 * 1024),
    )(x, w1_bf, b1)

    # ---- Stage 2: conv/BN/MLP tail, lane-dense (B, 1, Lp) output -----------
    tail_inputs = [wc1_bf, cb1, s1, t1, wc2_bf, cb2, s2, t2,
                   w2_bf, b2, w3t, b3, w4c, b4]

    out = pl.pallas_call(
        functools.partial(_tail_kernel, seq_len=L),
        out_shape=jax.ShapeDtypeStruct((B, 1, lp), jnp.float32),
        grid_spec=pltpu.PrefetchScalarGridSpec(
            num_scalar_prefetch=0,
            grid=(B,),
            in_specs=[pl.BlockSpec((1, 64, lp), lambda bi: (bi, 0, 0))]
                     + [_const_spec(p.shape) for p in tail_inputs],
            out_specs=pl.BlockSpec((1, 1, lp), lambda bi: (bi, 0, 0))),
        compiler_params=pltpu.CompilerParams(
            dimension_semantics=("parallel",),
            vmem_limit_bytes=48 * 1024 * 1024),
    )(h1, *tail_inputs)

    return out[:, 0, :L][..., None]                          # (B, L, 1)


# --------------------------------------------------------------------------
# Deterministic parameter construction (synthetic init, no checkpoint)
# --------------------------------------------------------------------------
def make_params(key):
    ks = jax.random.split(key, 20)
    rn = lambda k, shape, s=0.05: jax.random.normal(k, shape, jnp.float32) * s
    eps = 1e-3  # BatchNorm1d eps=0.001

    # lin1: torch weight (64, 1024) -> stored transposed (1024, 64)
    w1 = rn(ks[0], (1024, 64))
    b1 = rn(ks[1], (1, 64))

    # conv1: torch weight (out=32, in=64, k=7) -> (k, out, in)
    wc1 = jnp.transpose(rn(ks[2], (32, 64, 7)), (2, 0, 1))
    cb1 = rn(ks[3], (32, 1))
    g1 = 1.0 + rn(ks[4], (32, 1)); be1 = rn(ks[5], (32, 1))
    m1 = rn(ks[6], (32, 1)); v1 = 1.0 + jnp.abs(rn(ks[7], (32, 1)))
    s1 = g1 / jnp.sqrt(v1 + eps); t1 = be1 - m1 * s1

    # conv2: torch weight (out=32, in=32, k=5) -> (k, out, in)
    wc2 = jnp.transpose(rn(ks[8], (32, 32, 5)), (2, 0, 1))
    cb2 = rn(ks[9], (32, 1))
    g2 = 1.0 + rn(ks[10], (32, 1)); be2 = rn(ks[11], (32, 1))
    m2 = rn(ks[12], (32, 1)); v2 = 1.0 + jnp.abs(rn(ks[13], (32, 1)))
    s2 = g2 / jnp.sqrt(v2 + eps); t2 = be2 - m2 * s2

    # lin2 weight kept in torch (out, in) layout; lin3/lin4 transposed.
    w2 = rn(ks[14], (16, 32)); b2 = rn(ks[15], (16, 1))
    w3t = rn(ks[16], (16, 4)); b3 = rn(ks[17], (4, 1))
    w4c = rn(ks[18], (4, 1)); b4 = rn(ks[19], (1, 1))

    return [w1, b1, wc1, cb1, s1, t1, wc2, cb2, s2, t2,
            w2, b2, w3t, b3, w4c, b4]


# Pure-JAX reference (same math, channels-last, full f32) for a sanity check.
def reference(x, params):
    (w1, b1, wc1, cb1, s1, t1, wc2, cb2, s2, t2,
     w2, b2, w3t, b3, w4c, b4) = params

    def conv_same(h, wk, pad):  # h: (B, L, Cin), wk: (K, Cout, Cin)
        B_, L_, _ = h.shape
        hp = jnp.pad(h, ((0, 0), (pad, pad), (0, 0)))
        out = jnp.zeros((B_, L_, wk.shape[1]), jnp.float32)
        for t in range(wk.shape[0]):
            out = out + jnp.einsum('bli,oi->blo', hp[:, t:t + L_, :], wk[t])
        return out

    h = jax.nn.relu(x @ w1 + b1)                             # (B, L, 64)
    h = jax.nn.relu(conv_same(h, wc1, 3) + cb1[:, 0])
    h = h * s1[:, 0] + t1[:, 0]
    h = jax.nn.relu(conv_same(h, wc2, 2) + cb2[:, 0])
    h = h * s2[:, 0] + t2[:, 0]
    h = jax.nn.relu(jnp.einsum('blc,oc->blo', h, w2) + b2[:, 0])
    h = jax.nn.relu(h @ w3t + b3[:, 0])
    return jax.nn.sigmoid(h @ w4c + b4[:, 0])


if __name__ == "__main__":
    key = jax.random.PRNGKey(0)
    kx, kp = jax.random.split(key)

    B, L, D = 2, 16, 1024                   # lin1 fixes the feature dim at 1024
    x = jax.random.normal(kx, (B, L, D), jnp.float32)
    params = make_params(kp)

    out = jax.block_until_ready(seqcore_forward(x, params))
    ref = jax.block_until_ready(reference(x, params))

    assert out.shape == (B, L, 1)
    assert jnp.max(jnp.abs(out - ref)) < 2e-2, "mismatch vs pure-JAX reference"

    print("KERNEL_OK")
</pallas_src>

<mosaic_0001>
module attributes {stable_mosaic.version = 11 : i64} {
  func.func @_lin1_kernel(%arg0: i32, %arg1: i32, %arg2: memref<1x16x1024xf32, #tpu.memory_space<vmem>>, %arg3: memref<1024x64xbf16, #tpu.memory_space<vmem>>, %arg4: memref<1x64xf32, #tpu.memory_space<vmem>>, %arg5: memref<1x64x16xbf16, #tpu.memory_space<vmem>>) attributes {dimension_semantics = [#tpu.dimension_semantics<parallel>, #tpu.dimension_semantics<parallel>], iteration_bounds = array<i64: 2, 1>, scalar_prefetch = 0 : i64, scratch_operands = 0 : i64, tpu.core_type = #tpu.core_type<tc>, window_params = [{transform_indices = @transform_0, window_bounds = array<i64: 1, 16, 1024>}, {pipeline_mode = #tpu.pipeline_mode<synchronous>, transform_indices = @transform_1, window_bounds = array<i64: 1024, 64>}, {pipeline_mode = #tpu.pipeline_mode<synchronous>, transform_indices = @transform_2, window_bounds = array<i64: 1, 64>}, {transform_indices = @transform_3, window_bounds = array<i64: 1, 64, 16>}]} {
    %c0 = arith.constant 0 : index
    %c0_0 = arith.constant 0 : index
    %c0_1 = arith.constant 0 : index
    %0 = vector.load %arg2[%c0, %c0_0, %c0_1] : memref<1x16x1024xf32, #tpu.memory_space<vmem>>, vector<1x16x1024xf32>
    %1 = vector.shape_cast %0 : vector<1x16x1024xf32> to vector<16x1024xf32>
    %2 = arith.truncf %1 : vector<16x1024xf32> to vector<16x1024xbf16>
    %c0_2 = arith.constant 0 : index
    %c0_3 = arith.constant 0 : index
    %3 = vector.load %arg3[%c0_2, %c0_3] : memref<1024x64xbf16, #tpu.memory_space<vmem>>, vector<1024x64xbf16>
    %cst = arith.constant dense<0.000000e+00> : vector<16x64xf32>
    %4 = tpu.matmul %2, %3, %cst {dimension_numbers = #tpu.dot_dimension_numbers<[1], [0], [0], [1], [0, 0, 1, 1], [], []>} : vector<16x1024xbf16>, vector<1024x64xbf16>, vector<16x64xf32> -> vector<16x64xf32>
    %c0_4 = arith.constant 0 : index
    %c0_5 = arith.constant 0 : index
    %5 = vector.load %arg4[%c0_4, %c0_5] : memref<1x64xf32, #tpu.memory_space<vmem>>, vector<1x64xf32>
    %6 = vector.broadcast %5 : vector<1x64xf32> to vector<16x64xf32>
    %7 = arith.addf %4, %6 : vector<16x64xf32>
    %cst_6 = arith.constant 0.000000e+00 : f32
    %8 = vector.broadcast %cst_6 : f32 to vector<16x64xf32>
    %9 = arith.maximumf %7, %8 : vector<16x64xf32>
    %10 = tpu.transpose %9, [1, 0] : vector<16x64xf32> -> vector<64x16xf32>
    %11 = arith.truncf %10 : vector<64x16xf32> to vector<64x16xbf16>
    %c0_7 = arith.constant 0 : index
    %c0_8 = arith.constant 0 : index
    %c0_9 = arith.constant 0 : index
    %12 = vector.load %arg5[%c0_7, %c0_8, %c0_9] : memref<1x64x16xbf16, #tpu.memory_space<vmem>>, vector<1x64x16xbf16>
    %13 = vector.shape_cast %12 : vector<1x64x16xbf16> to vector<64x16xbf16>
    %14 = vector.shape_cast %11 : vector<64x16xbf16> to vector<1x64x16xbf16>
    tpu.vector_store %arg5[%c0_7, %c0_8, %c0_9], %14 {strides = array<i32>} : memref<1x64x16xbf16, #tpu.memory_space<vmem>>, vector<1x64x16xbf16>,
    return
  }
  func.func @transform_0(%arg0: i32, %arg1: i32) -> (i32, i32, i32) {
    %c0_i32 = arith.constant 0 : i32
    %c0_i32_0 = arith.constant 0 : i32
    return %arg0, %arg1, %c0_i32 : i32, i32, i32
  }
  func.func @transform_1(%arg0: i32, %arg1: i32) -> (i32, i32) {
    %c0_i32 = arith.constant 0 : i32
    %c0_i32_0 = arith.constant 0 : i32
    %c0_i32_1 = arith.constant 0 : i32
    return %c0_i32, %c0_i32_0 : i32, i32
  }
  func.func @transform_2(%arg0: i32, %arg1: i32) -> (i32, i32) {
    %c0_i32 = arith.constant 0 : i32
    %c0_i32_0 = arith.constant 0 : i32
    %c0_i32_1 = arith.constant 0 : i32
    return %c0_i32, %c0_i32_0 : i32, i32
  }
  func.func @transform_3(%arg0: i32, %arg1: i32) -> (i32, i32, i32) {
    %c0_i32 = arith.constant 0 : i32
    %c0_i32_0 = arith.constant 0 : i32
    return %arg0, %c0_i32, %arg1 : i32, i32, i32
  }
}

</mosaic_0001>

<llo_original>
// kernel: tpu_custom_call.1
$region0: #{tpu_custom_call.1}
  #allocation0 [shape = 'u32[]', space=smem, size = 0x4, offset = 0x4, fixed_abs, tag = 'smem constant byte address 0x4 - core index']
  #allocation1 [shape = 'u32[144,128]{1,0:T(1,128)}', space=vmem, size = 0x12000, scoped, tag = 'internal scratch']
  %s0 = inlined_call_operand.vmem [shape: f32[2,16,1024], index: 0, kind: input, shape index: {}]
  %s1 = inlined_call_operand.vmem [shape: bf16[1024,64], index: 1, kind: input, shape index: {}]
  %s2 = inlined_call_operand.vmem [shape: f32[1,64], index: 2, kind: input, shape index: {}]
  %s3 = inlined_call_operand.vmem [shape: bf16[2,64,16], index: 3, kind: output, shape index: {}]
  %s4 = sld [smem:[#allocation0]]
  $region45: #{tpu_custom_call.1} parent=0
    _
  %s6 = ssub.s32 1, %s4
  %s7 = scalar_select 0, %s6, %s4
  loop: start=0, step=1, limit=4
  $region2: #{tpu_custom_call.1} parent=0 // loop_pre_header
    _
  $region3: #{tpu_custom_call.1} parent=0 // loop_header
    %s9 = sphi 0, %s13
    %p10 = scmp.ge.s32.totalorder %s9, 4
    %s16 = sphi 0, %s28
    %s17 = sphi 0, %s24
    %s18 = sphi 0, %s16
    %s19 = sphi 0, %s17
    %s20 = sphi 0, %s18
    %s21 = sphi 0, %s19
    %s33 = sphi 0, %s35
    %s36 = sphi 0, %s33
    %s37 = sphi 0, %s36
    %s53 = sphi 0, %s37
    %s57 = sphi 0, %s57
    %s59 = sphi 0, %s57
    %s60 = sphi 0, %s59
    %s74 = sphi 0, %s60
    %s78 = sphi 0, %s78
    %s80 = sphi 0, %s78
    %s81 = sphi 0, %s80
    %s95 = sphi 0, %s81
    %s103 = sphi 0, %s105
    %s106 = sphi 0, %s103
    %s107 = sphi 0, %s106
    %s123 = sphi 0, %s107
  $region4: #{tpu_custom_call.1} parent=0 // loop_header_branch
    %12 = sbr.rel (%p10) target = $region8
  $region5: #{tpu_custom_call.1} parent=0 // loop_body
    %s14 = ssub.s32 %s9, 1
    %s15 = ssub.s32 %s9, 2
    %s22 = sadd.s32 1, %s17
    %p23 = scmp.ge.s32.totalorder %s22, 1
    %s24 = scalar_select %p23, 0, %s22
    %s25 = sadd.s32 1, %s16
    %s26 = scalar_select %p23, %s25, %s16
    %p27 = scmp.ge.s32.totalorder %s26, 2
    %s28 = scalar_select %p27, 0, %s26
    %s29 = ssub.s32 %s16, %s28
    %s30 = ssub.s32 %s17, %s24
    %s31 = sor.u32 %s29, %s30
    %p32 = scmp.eq.s32.totalorder %s31, 0
    %s34 = sadd.s32 %s33, 1
    %s35 = scalar_select %p32, %s33, %s34
    %p38 = pneg %p32
    %p39 = scmp.eq.s32.totalorder %s9, 1
    %p40 = por %p38, %p39
    %p41 = scmp.ne.s32.totalorder %s33, %s36
    %p42 = scmp.eq.s32.totalorder %s9, 0
    %p43 = por %p41, %p42
    %p44 = scmp.ne.s32.totalorder %s33, %s36
    %p45 = scmp.eq.s32.totalorder %s14, 1
    %p46 = por %p44, %p45
    %p47 = scmp.ne.s32.totalorder %s36, %s37
    %p48 = scmp.eq.s32.totalorder %s14, 0
    %p49 = por %p47, %p48
    %p50 = scmp.ne.s32.totalorder %s36, %s37
    %p51 = scmp.eq.s32.totalorder %s15, 1
    %p52 = por %p50, %p51
    %p54 = scmp.ne.s32.totalorder %s37, %s53
    %p55 = scmp.eq.s32.totalorder %s15, 0
    %p56 = por %p54, %p55
    %s58 = sadd.s32 %s57, 1
    %p61 = scmp.eq.s32.totalorder %s9, 1
    %p62 = scmp.ne.s32.totalorder %s57, %s59
    %p63 = scmp.eq.s32.totalorder %s9, 0
    %p64 = por %p62, %p63
    %p65 = scmp.ne.s32.totalorder %s57, %s59
    %p66 = scmp.eq.s32.totalorder %s14, 1
    %p67 = por %p65, %p66
    %p68 = scmp.ne.s32.totalorder %s59, %s60
    %p69 = scmp.eq.s32.totalorder %s14, 0
    %p70 = por %p68, %p69
    %p71 = scmp.ne.s32.totalorder %s59, %s60
    %p72 = scmp.eq.s32.totalorder %s15, 1
    %p73 = por %p71, %p72
    %p75 = scmp.ne.s32.totalorder %s60, %s74
    %p76 = scmp.eq.s32.totalorder %s15, 0
    %p77 = por %p75, %p76
    %s79 = sadd.s32 %s78, 1
    %p82 = scmp.eq.s32.totalorder %s9, 1
    %p83 = scmp.ne.s32.totalorder %s78, %s80
    %p84 = scmp.eq.s32.totalorder %s9, 0
    %p85 = por %p83, %p84
    %p86 = scmp.ne.s32.totalorder %s78, %s80
    %p87 = scmp.eq.s32.totalorder %s14, 1
    %p88 = por %p86, %p87
    %p89 = scmp.ne.s32.totalorder %s80, %s81
    %p90 = scmp.eq.s32.totalorder %s14, 0
    %p91 = por %p89, %p90
    %p92 = scmp.ne.s32.totalorder %s80, %s81
    %p93 = scmp.eq.s32.totalorder %s15, 1
    %p94 = por %p92, %p93
    %p96 = scmp.ne.s32.totalorder %s81, %s95
    %p97 = scmp.eq.s32.totalorder %s15, 0
    %p98 = por %p96, %p97
    %s99 = ssub.s32 %s16, %s28
    %s100 = ssub.s32 %s17, %s24
    %s101 = sor.u32 %s99, %s100
    %p102 = scmp.eq.s32.totalorder %s101, 0
    %s104 = sadd.s32 %s103, 1
    %s105 = scalar_select %p102, %s103, %s104
    %p108 = pneg %p102
    %p109 = scmp.eq.s32.totalorder %s9, 1
    %p110 = por %p108, %p109
    %p111 = scmp.ne.s32.totalorder %s103, %s106
    %p112 = scmp.eq.s32.totalorder %s9, 0
    %p113 = por %p111, %p112
    %p114 = scmp.ne.s32.totalorder %s103, %s106
    %p115 = scmp.eq.s32.totalorder %s14, 1
    %p116 = por %p114, %p115
    %p117 = scmp.ne.s32.totalorder %s106, %s107
    %p118 = scmp.eq.s32.totalorder %s14, 0
    %p119 = por %p117, %p118
    %p120 = scmp.ne.s32.totalorder %s106, %s107
    %p121 = scmp.eq.s32.totalorder %s15, 1
    %p122 = por %p120, %p121
    %p124 = scmp.ne.s32.totalorder %s107, %s123
    %p125 = scmp.eq.s32.totalorder %s15, 0
    %p126 = por %p124, %p125
    %p127 = scmp.le.s32.totalorder 1, %s9
    %p128 = scmp.lt.s32.totalorder %s9, 3
    %p129 = pnand %p127, %p128
    %p130 = pneg %p129
    // Predicated region
    $region9: #{tpu_custom_call.1} parent=5 // pred_check
      _
    $region10: #{tpu_custom_call.1} parent=5 // pred_check_branch
      %132 = sbr.rel (%p129) target = $region12
    $region11: #{tpu_custom_call.1} parent=5 // pred_region
      %s133 = ssub.s32 %s9, 1
      // Predicated region
      $region13: #{tpu_custom_call.1} parent=11 // pred_check
        %p134 = pneg %p70
      $region14: #{tpu_custom_call.1} parent=11 // pred_check_branch
        %136 = sbr.rel (%p134) target = $region16
      $region15: #{tpu_custom_call.1} parent=11 // pred_region
        _
      $region16: #{tpu_custom_call.1} parent=11 // pred_fallthru
        _
      // Predicated region
      $region17: #{tpu_custom_call.1} parent=11 // pred_check
        %p137 = pneg %p91
      $region18: #{tpu_custom_call.1} parent=11 // pred_check_branch
        %139 = sbr.rel (%p137) target = $region20
      $region19: #{tpu_custom_call.1} parent=11 // pred_region
        _
      $region20: #{tpu_custom_call.1} parent=11 // pred_fallthru
        _
    $region12: #{tpu_custom_call.1} parent=5 // pred_fallthru
      _
    %p140 = scmp.lt.s32.totalorder %s9, 2
    // Predicated region
    $region21: #{tpu_custom_call.1} parent=5 // pred_check
      %p141 = pneg %p140
    $region22: #{tpu_custom_call.1} parent=5 // pred_check_branch
      %143 = sbr.rel (%p141) target = $region24
    $region23: #{tpu_custom_call.1} parent=5 // pred_region
      // Predicated region
      $region25: #{tpu_custom_call.1} parent=23 // pred_check
        %p144 = pneg %p43
      $region26: #{tpu_custom_call.1} parent=23 // pred_check_branch
        %146 = sbr.rel (%p144) target = $region28
      $region27: #{tpu_custom_call.1} parent=23 // pred_region
        %s147 = smul.u32 2, %s17
        %p148 = scmp.lt.s32.totalorder %s16, 1
        %s149 = scalar_select %p148, %s16, 1
        %p150 = scmp.lt.s32.totalorder %s147, 1
        %s151 = scalar_select %p150, %s147, 1
        %s152 = smul.addr %s151, 8
        %s153 = smul.addr %s149, 16
        %s154 = sadd.s32 %s152, %s153
        %s155 = smul.addr %s154, 8
        %s156 = scalar_lea.vmem %s0, %s155
        %s157 = smul.u32 2, %s17
      $region28: #{tpu_custom_call.1} parent=23 // pred_fallthru
        _
    $region24: #{tpu_custom_call.1} parent=5 // pred_fallthru
      _
    %p158 = scmp.le.s32.totalorder 1, %s9
    %p159 = scmp.lt.s32.totalorder %s9, 3
    %p160 = pnand %p158, %p159
    %p161 = pneg %p160
    // Predicated region
    $region29: #{tpu_custom_call.1} parent=5 // pred_check
      _
    $region30: #{tpu_custom_call.1} parent=5 // pred_check_branch
      %163 = sbr.rel (%p160) target = $region32
    $region31: #{tpu_custom_call.1} parent=5 // pred_region
      %s164 = ssub.s32 %s9, 1
      %s165 = smul.u32 2, %s19
      %p166 = scmp.lt.s32.totalorder %s18, 1
      %s167 = scalar_select %p166, %s18, 1
      %p168 = scmp.lt.s32.totalorder %s165, 1
      %s169 = scalar_select %p168, %s165, 1
      %s170 = smul.addr %s169, 8
      %s171 = smul.addr %s167, 16
      %s172 = sadd.s32 %s170, %s171
      %s173 = smul.addr %s172, 8
      %s174 = scalar_lea.vmem %s0, %s173
      %p175 = pneg %p49
      %p176 = pneg %p46
      %p177 = pneg %p70
      %p178 = pneg %p67
      %p179 = pneg %p91
      %p180 = pneg %p88
      %p181 = pneg %p119
      %p182 = pneg %p116
      %p183 = scmp.lt.s32.totalorder %s18, 1
      %s184 = scalar_select %p183, %s18, 1
      %p185 = scmp.lt.s32.totalorder %s19, 0
      %s186 = scalar_select %p185, %s19, 0
      %s187 = smul.addr %s184, 8
      %s188 = sadd.s32 %s186, %s187
      %s189 = smul.addr %s188, 4
      %s190 = scalar_lea.vmem %s3, %s189
      %s191 = smul.u32 2, %s19
      %p192 = scmp.lt.s32.totalorder %s18, 1
      %s193 = scalar_select %p192, %s18, 1
      %p194 = scmp.lt.s32.totalorder %s191, 1
      %s195 = scalar_select %p194, %s191, 1
      %s196 = smul.addr %s195, 8
      %s197 = smul.addr %s193, 16
      %s198 = sadd.s32 %s196, %s197
      %s199 = smul.addr %s198, 8
      %s200 = scalar_lea.vmem %s0, %s199
      %s201 = smul.u32 2, %s19
      %p202 = scmp.lt.s32.totalorder %s18, 1
      %s203 = scalar_select %p202, %s18, 1
      %p204 = scmp.lt.s32.totalorder %s19, 0
      %s205 = scalar_select %p204, %s19, 0
      %s206 = smul.addr %s203, 8
      %s207 = sadd.s32 %s205, %s206
      %s208 = smul.addr %s207, 4
      %s209 = scalar_lea.vmem %s3, %s208
      %v211 = vld [vmem:[%s200] sm:$0xff]
      %v212 = vld [vmem:[%s200 + $0x8] sm:$0xff]
      %v213 = vld [vmem:[%s200 + $0x10] sm:$0xff]
      %v214 = vld [vmem:[%s200 + $0x18] sm:$0xff]
      %v215 = vld [vmem:[%s200 + $0x20] sm:$0xff]
      %v216 = vld [vmem:[%s200 + $0x28] sm:$0xff]
      %v217 = vld [vmem:[%s200 + $0x30] sm:$0xff]
      %v218 = vld [vmem:[%s200 + $0x38] sm:$0xff]
      %v219 = vld [vmem:[%s200 + $0x40] sm:$0xff]
      %v220 = vld [vmem:[%s200 + $0x48] sm:$0xff]
      %v221 = vld [vmem:[%s200 + $0x50] sm:$0xff]
      %v222 = vld [vmem:[%s200 + $0x58] sm:$0xff]
      %v223 = vld [vmem:[%s200 + $0x60] sm:$0xff]
      %v224 = vld [vmem:[%s200 + $0x68] sm:$0xff]
      %v225 = vld [vmem:[%s200 + $0x70] sm:$0xff]
      %v226 = vld [vmem:[%s200 + $0x78] sm:$0xff]
      %v227 = vpack.c.bf16 %v219, %v211
      %v228 = vpack.c.bf16 %v220, %v212
      %v229 = vpack.c.bf16 %v221, %v213
      %v230 = vpack.c.bf16 %v222, %v214
      %v231 = vpack.c.bf16 %v223, %v215
      %v232 = vpack.c.bf16 %v224, %v216
      %v233 = vpack.c.bf16 %v225, %v217
      %v234 = vpack.c.bf16 %v226, %v218
      %v235 = vld [vmem:[%s1] sm:$0xf]
      %v236 = vld [vmem:[%s1 + $0x4] sm:$0xf]
      %v237 = vld [vmem:[%s1 + $0x8] sm:$0xf]
      %v238 = vld [vmem:[%s1 + $0xc] sm:$0xf]
      %v239 = vld [vmem:[%s1 + $0x10] sm:$0xf]
      %v240 = vld [vmem:[%s1 + $0x14] sm:$0xf]
      %v241 = vld [vmem:[%s1 + $0x18] sm:$0xf]
      %v242 = vld [vmem:[%s1 + $0x1c] sm:$0xf]
      %v243 = vld [vmem:[%s1 + $0x20] sm:$0xf]
      %v244 = vld [vmem:[%s1 + $0x24] sm:$0xf]
      %v245 = vld [vmem:[%s1 + $0x28] sm:$0xf]
      %v246 = vld [vmem:[%s1 + $0x2c] sm:$0xf]
      %v247 = vld [vmem:[%s1 + $0x30] sm:$0xf]
      %v248 = vld [vmem:[%s1 + $0x34] sm:$0xf]
      %v249 = vld [vmem:[%s1 + $0x38] sm:$0xf]
      %v250 = vld [vmem:[%s1 + $0x3c] sm:$0xf]
      %v251 = vld [vmem:[%s1 + $0x40] sm:$0xf]
      %v252 = vld [vmem:[%s1 + $0x44] sm:$0xf]
      %v253 = vld [vmem:[%s1 + $0x48] sm:$0xf]
      %v254 = vld [vmem:[%s1 + $0x4c] sm:$0xf]
      %v255 = vld [vmem:[%s1 + $0x50] sm:$0xf]
      %v256 = vld [vmem:[%s1 + $0x54] sm:$0xf]
      %v257 = vld [vmem:[%s1 + $0x58] sm:$0xf]
      %v258 = vld [vmem:[%s1 + $0x5c] sm:$0xf]
      %v259 = vld [vmem:[%s1 + $0x60] sm:$0xf]
      %v260 = vld [vmem:[%s1 + $0x64] sm:$0xf]
      %v261 = vld [vmem:[%s1 + $0x68] sm:$0xf]
      %v262 = vld [vmem:[%s1 + $0x6c] sm:$0xf]
      %v263 = vld [vmem:[%s1 + $0x70] sm:$0xf]
      %v264 = vld [vmem:[%s1 + $0x74] sm:$0xf]
      %v265 = vld [vmem:[%s1 + $0x78] sm:$0xf]
      %v266 = vld [vmem:[%s1 + $0x7c] sm:$0xf]
      %v267 = vld [vmem:[%s1 + $0x80] sm:$0xf]
      %v268 = vld [vmem:[%s1 + $0x84] sm:$0xf]
      %v269 = vld [vmem:[%s1 + $0x88] sm:$0xf]
      %v270 = vld [vmem:[%s1 + $0x8c] sm:$0xf]
      %v271 = vld [vmem:[%s1 + $0x90] sm:$0xf]
      %v272 = vld [vmem:[%s1 + $0x94] sm:$0xf]
      %v273 = vld [vmem:[%s1 + $0x98] sm:$0xf]
      %v274 = vld [vmem:[%s1 + $0x9c] sm:$0xf]
      %v275 = vld [vmem:[%s1 + $0xa0] sm:$0xf]
      %v276 = vld [vmem:[%s1 + $0xa4] sm:$0xf]
      %v277 = vld [vmem:[%s1 + $0xa8] sm:$0xf]
      %v278 = vld [vmem:[%s1 + $0xac] sm:$0xf]
      %v279 = vld [vmem:[%s1 + $0xb0] sm:$0xf]
      %v280 = vld [vmem:[%s1 + $0xb4] sm:$0xf]
      %v281 = vld [vmem:[%s1 + $0xb8] sm:$0xf]
      %v282 = vld [vmem:[%s1 + $0xbc] sm:$0xf]
      %v283 = vld [vmem:[%s1 + $0xc0] sm:$0xf]
      %v284 = vld [vmem:[%s1 + $0xc4] sm:$0xf]
      %v285 = vld [vmem:[%s1 + $0xc8] sm:$0xf]
      %v286 = vld [vmem:[%s1 + $0xcc] sm:$0xf]
      %v287 = vld [vmem:[%s1 + $0xd0] sm:$0xf]
      %v288 = vld [vmem:[%s1 + $0xd4] sm:$0xf]
      %v289 = vld [vmem:[%s1 + $0xd8] sm:$0xf]
      %v290 = vld [vmem:[%s1 + $0xdc] sm:$0xf]
      %v291 = vld [vmem:[%s1 + $0xe0] sm:$0xf]
      %v292 = vld [vmem:[%s1 + $0xe4] sm:$0xf]
      %v293 = vld [vmem:[%s1 + $0xe8] sm:$0xf]
      %v294 = vld [vmem:[%s1 + $0xec] sm:$0xf]
      %v295 = vld [vmem:[%s1 + $0xf0] sm:$0xf]
      %v296 = vld [vmem:[%s1 + $0xf4] sm:$0xf]
      %v297 = vld [vmem:[%s1 + $0xf8] sm:$0xf]
      %v298 = vld [vmem:[%s1 + $0xfc] sm:$0xf]
      %v299 = vld [vmem:[%s1 + $0x100] sm:$0xf]
      %v300 = vld [vmem:[%s1 + $0x104] sm:$0xf]
      %v301 = vld [vmem:[%s1 + $0x108] sm:$0xf]
      %v302 = vld [vmem:[%s1 + $0x10c] sm:$0xf]
      %v303 = vld [vmem:[%s1 + $0x110] sm:$0xf]
      %v304 = vld [vmem:[%s1 + $0x114] sm:$0xf]
      %v305 = vld [vmem:[%s1 + $0x118] sm:$0xf]
      %v306 = vld [vmem:[%s1 + $0x11c] sm:$0xf]
      %v307 = vld [vmem:[%s1 + $0x120] sm:$0xf]
      %v308 = vld [vmem:[%s1 + $0x124] sm:$0xf]
      %v309 = vld [vmem:[%s1 + $0x128] sm:$0xf]
      %v310 = vld [vmem:[%s1 + $0x12c] sm:$0xf]
      %v311 = vld [vmem:[%s1 + $0x130] sm:$0xf]
      %v312 = vld [vmem:[%s1 + $0x134] sm:$0xf]
      %v313 = vld [vmem:[%s1 + $0x138] sm:$0xf]
      %v314 = vld [vmem:[%s1 + $0x13c] sm:$0xf]
      %v315 = vld [vmem:[%s1 + $0x140] sm:$0xf]
      %v316 = vld [vmem:[%s1 + $0x144] sm:$0xf]
      %v317 = vld [vmem:[%s1 + $0x148] sm:$0xf]
      %v318 = vld [vmem:[%s1 + $0x14c] sm:$0xf]
      %v319 = vld [vmem:[%s1 + $0x150] sm:$0xf]
      %v320 = vld [vmem:[%s1 + $0x154] sm:$0xf]
      %v321 = vld [vmem:[%s1 + $0x158] sm:$0xf]
      %v322 = vld [vmem:[%s1 + $0x15c] sm:$0xf]
      %v323 = vld [vmem:[%s1 + $0x160] sm:$0xf]
      %v324 = vld [vmem:[%s1 + $0x164] sm:$0xf]
      %v325 = vld [vmem:[%s1 + $0x168] sm:$0xf]
      %v326 = vld [vmem:[%s1 + $0x16c] sm:$0xf]
      %v327 = vld [vmem:[%s1 + $0x170] sm:$0xf]
      %v328 = vld [vmem:[%s1 + $0x174] sm:$0xf]
      %v329 = vld [vmem:[%s1 + $0x178] sm:$0xf]
      %v330 = vld [vmem:[%s1 + $0x17c] sm:$0xf]
      %v331 = vld [vmem:[%s1 + $0x180] sm:$0xf]
      %v332 = vld [vmem:[%s1 + $0x184] sm:$0xf]
      %v333 = vld [vmem:[%s1 + $0x188] sm:$0xf]
      %v334 = vld [vmem:[%s1 + $0x18c] sm:$0xf]
      %v335 = vld [vmem:[%s1 + $0x190] sm:$0xf]
      %v336 = vld [vmem:[%s1 + $0x194] sm:$0xf]
      %v337 = vld [vmem:[%s1 + $0x198] sm:$0xf]
      %v338 = vld [vmem:[%s1 + $0x19c] sm:$0xf]
      %v339 = vld [vmem:[%s1 + $0x1a0] sm:$0xf]
      %v340 = vld [vmem:[%s1 + $0x1a4] sm:$0xf]
      %v341 = vld [vmem:[%s1 + $0x1a8] sm:$0xf]
      %v342 = vld [vmem:[%s1 + $0x1ac] sm:$0xf]
      %v343 = vld [vmem:[%s1 + $0x1b0] sm:$0xf]
      %v344 = vld [vmem:[%s1 + $0x1b4] sm:$0xf]
      %v345 = vld [vmem:[%s1 + $0x1b8] sm:$0xf]
      %v346 = vld [vmem:[%s1 + $0x1bc] sm:$0xf]
      %v347 = vld [vmem:[%s1 + $0x1c0] sm:$0xf]
      %v348 = vld [vmem:[%s1 + $0x1c4] sm:$0xf]
      %v349 = vld [vmem:[%s1 + $0x1c8] sm:$0xf]
      %v350 = vld [vmem:[%s1 + $0x1cc] sm:$0xf]
      %v351 = vld [vmem:[%s1 + $0x1d0] sm:$0xf]
      %v352 = vld [vmem:[%s1 + $0x1d4] sm:$0xf]
      %v353 = vld [vmem:[%s1 + $0x1d8] sm:$0xf]
      %v354 = vld [vmem:[%s1 + $0x1dc] sm:$0xf]
      %v355 = vld [vmem:[%s1 + $0x1e0] sm:$0xf]
      %v356 = vld [vmem:[%s1 + $0x1e4] sm:$0xf]
      %v357 = vld [vmem:[%s1 + $0x1e8] sm:$0xf]
      %v358 = vld [vmem:[%s1 + $0x1ec] sm:$0xf]
      %v359 = vld [vmem:[%s1 + $0x1f0] sm:$0xf]
      %v360 = vld [vmem:[%s1 + $0x1f4] sm:$0xf]
      %v361 = vld [vmem:[%s1 + $0x1f8] sm:$0xf]
      %v362 = vld [vmem:[%s1 + $0x1fc] sm:$0xf]
      %v363 = vld [vmem:[%s2] sm:$0x1]
      %v365 = vlaneseq
      %v366 = vshrl.u32 %v365, 7
      %v367 = vsub.s32 0, %v366
      %v368 = vrot.slane %v363, %v367
      %v498 = vunpack.c.l.b16 %v235
      %v499 = vunpack.c.l.b16 %v236
      %v500 = vunpack.c.l.b16 %v237
      %v501 = vunpack.c.l.b16 %v238
      %v502 = vunpack.c.l.b16 %v239
      %v503 = vunpack.c.l.b16 %v240
      %v504 = vunpack.c.l.b16 %v241
      %v505 = vunpack.c.l.b16 %v242
      %v506 = vunpack.c.l.b16 %v243
      %v507 = vunpack.c.l.b16 %v244
      %v508 = vunpack.c.l.b16 %v245
      %v509 = vunpack.c.l.b16 %v246
      %v510 = vunpack.c.l.b16 %v247
      %v511 = vunpack.c.l.b16 %v248
      %v512 = vunpack.c.l.b16 %v249
      %v513 = vunpack.c.l.b16 %v250
      %v514 = vunpack.c.l.b16 %v251
      %v515 = vunpack.c.l.b16 %v252
      %v516 = vunpack.c.l.b16 %v253
      %v517 = vunpack.c.l.b16 %v254
      %v518 = vunpack.c.l.b16 %v255
      %v519 = vunpack.c.l.b16 %v256
      %v520 = vunpack.c.l.b16 %v257
      %v521 = vunpack.c.l.b16 %v258
      %v522 = vunpack.c.l.b16 %v259
      %v523 = vunpack.c.l.b16 %v260
      %v524 = vunpack.c.l.b16 %v261
      %v525 = vunpack.c.l.b16 %v262
      %v526 = vunpack.c.l.b16 %v263
      %v527 = vunpack.c.l.b16 %v264
      %v528 = vunpack.c.l.b16 %v265
      %v529 = vunpack.c.l.b16 %v266
      %v530 = vunpack.c.l.b16 %v267
      %v531 = vunpack.c.l.b16 %v268
      %v532 = vunpack.c.l.b16 %v269
      %v533 = vunpack.c.l.b16 %v270
      %v534 = vunpack.c.l.b16 %v271
      %v535 = vunpack.c.l.b16 %v272
      %v536 = vunpack.c.l.b16 %v273
      %v537 = vunpack.c.l.b16 %v274
      %v538 = vunpack.c.l.b16 %v275
      %v539 = vunpack.c.l.b16 %v276
      %v540 = vunpack.c.l.b16 %v277
      %v541 = vunpack.c.l.b16 %v278
      %v542 = vunpack.c.l.b16 %v279
      %v543 = vunpack.c.l.b16 %v280
      %v544 = vunpack.c.l.b16 %v281
      %v545 = vunpack.c.l.b16 %v282
      %v546 = vunpack.c.l.b16 %v283
      %v547 = vunpack.c.l.b16 %v284
      %v548 = vunpack.c.l.b16 %v285
      %v549 = vunpack.c.l.b16 %v286
      %v550 = vunpack.c.l.b16 %v287
      %v551 = vunpack.c.l.b16 %v288
      %v552 = vunpack.c.l.b16 %v289
      %v553 = vunpack.c.l.b16 %v290
      %v554 = vunpack.c.l.b16 %v291
      %v555 = vunpack.c.l.b16 %v292
      %v556 = vunpack.c.l.b16 %v293
      %v557 = vunpack.c.l.b16 %v294
      %v558 = vunpack.c.l.b16 %v295
      %v559 = vunpack.c.l.b16 %v296
      %v560 = vunpack.c.l.b16 %v297
      %v561 = vunpack.c.l.b16 %v298
      %v562 = vunpack.c.l.b16 %v299
      %v563 = vunpack.c.l.b16 %v300
      %v564 = vunpack.c.l.b16 %v301
      %v565 = vunpack.c.l.b16 %v302
      %v566 = vunpack.c.l.b16 %v303
      %v567 = vunpack.c.l.b16 %v304
      %v568 = vunpack.c.l.b16 %v305
      %v569 = vunpack.c.l.b16 %v306
      %v570 = vunpack.c.l.b16 %v307
      %v571 = vunpack.c.l.b16 %v308
      %v572 = vunpack.c.l.b16 %v309
      %v573 = vunpack.c.l.b16 %v310
      %v574 = vunpack.c.l.b16 %v311
      %v575 = vunpack.c.l.b16 %v312
      %v576 = vunpack.c.l.b16 %v313
      %v577 = vunpack.c.l.b16 %v314
      %v578 = vunpack.c.l.b16 %v315
      %v579 = vunpack.c.l.b16 %v316
      %v580 = vunpack.c.l.b16 %v317
      %v581 = vunpack.c.l.b16 %v318
      %v582 = vunpack.c.l.b16 %v319
      %v583 = vunpack.c.l.b16 %v320
      %v584 = vunpack.c.l.b16 %v321
      %v585 = vunpack.c.l.b16 %v322
      %v586 = vunpack.c.l.b16 %v323
      %v587 = vunpack.c.l.b16 %v324
      %v588 = vunpack.c.l.b16 %v325
      %v589 = vunpack.c.l.b16 %v326
      %v590 = vunpack.c.l.b16 %v327
      %v591 = vunpack.c.l.b16 %v328
      %v592 = vunpack.c.l.b16 %v329
      %v593 = vunpack.c.l.b16 %v330
      %v594 = vunpack.c.l.b16 %v331
      %v595 = vunpack.c.l.b16 %v332
      %v596 = vunpack.c.l.b16 %v333
      %v597 = vunpack.c.l.b16 %v334
      %v598 = vunpack.c.l.b16 %v335
      %v599 = vunpack.c.l.b16 %v336
      %v600 = vunpack.c.l.b16 %v337
      %v601 = vunpack.c.l.b16 %v338
      %v602 = vunpack.c.l.b16 %v339
      %v603 = vunpack.c.l.b16 %v340
      %v604 = vunpack.c.l.b16 %v341
      %v605 = vunpack.c.l.b16 %v342
      %v606 = vunpack.c.l.b16 %v343
      %v607 = vunpack.c.l.b16 %v344
      %v608 = vunpack.c.l.b16 %v345
      %v609 = vunpack.c.l.b16 %v346
      %v610 = vunpack.c.l.b16 %v347
      %v611 = vunpack.c.l.b16 %v348
      %v612 = vunpack.c.l.b16 %v349
      %v613 = vunpack.c.l.b16 %v350
      %v614 = vunpack.c.l.b16 %v351
      %v615 = vunpack.c.l.b16 %v352
      %v616 = vunpack.c.l.b16 %v353
      %v617 = vunpack.c.l.b16 %v354
      %v618 = vunpack.c.l.b16 %v355
      %v619 = vunpack.c.l.b16 %v356
      %v620 = vunpack.c.l.b16 %v357
      %v621 = vunpack.c.l.b16 %v358
      %v622 = vunpack.c.l.b16 %v359
      %v623 = vunpack.c.l.b16 %v360
      %v624 = vunpack.c.l.b16 %v361
      %v625 = vunpack.c.l.b16 %v362
      %v626 = vpack.c.b16 %v499, %v498
      %v627 = vpack.c.b16 %v501, %v500
      %v628 = vpack.c.b16 %v503, %v502
      %v629 = vpack.c.b16 %v505, %v504
      %v630 = vpack.c.b16 %v507, %v506
      %v631 = vpack.c.b16 %v509, %v508
      %v632 = vpack.c.b16 %v511, %v510
      %v633 = vpack.c.b16 %v513, %v512
      %v634 = vpack.c.b16 %v515, %v514
      %v635 = vpack.c.b16 %v517, %v516
      %v636 = vpack.c.b16 %v519, %v518
      %v637 = vpack.c.b16 %v521, %v520
      %v638 = vpack.c.b16 %v523, %v522
      %v639 = vpack.c.b16 %v525, %v524
      %v640 = vpack.c.b16 %v527, %v526
      %v641 = vpack.c.b16 %v529, %v528
      %v642 = vpack.c.b16 %v531, %v530
      %v643 = vpack.c.b16 %v533, %v532
      %v644 = vpack.c.b16 %v535, %v534
      %v645 = vpack.c.b16 %v537, %v536
      %v646 = vpack.c.b16 %v539, %v538
      %v647 = vpack.c.b16 %v541, %v540
      %v648 = vpack.c.b16 %v543, %v542
      %v649 = vpack.c.b16 %v545, %v544
      %v650 = vpack.c.b16 %v547, %v546
      %v651 = vpack.c.b16 %v549, %v548
      %v652 = vpack.c.b16 %v551, %v550
      %v653 = vpack.c.b16 %v553, %v552
      %v654 = vpack.c.b16 %v555, %v554
      %v655 = vpack.c.b16 %v557, %v556
      %v656 = vpack.c.b16 %v559, %v558
      %v657 = vpack.c.b16 %v561, %v560
      %v658 = vpack.c.b16 %v563, %v562
      %v659 = vpack.c.b16 %v565, %v564
      %v660 = vpack.c.b16 %v567, %v566
      %v661 = vpack.c.b16 %v569, %v568
      %v662 = vpack.c.b16 %v571, %v570
      %v663 = vpack.c.b16 %v573, %v572
      %v664 = vpack.c.b16 %v575, %v574
      %v665 = vpack.c.b16 %v577, %v576
      %v666 = vpack.c.b16 %v579, %v578
      %v667 = vpack.c.b16 %v581, %v580
      %v668 = vpack.c.b16 %v583, %v582
      %v669 = vpack.c.b16 %v585, %v584
      %v670 = vpack.c.b16 %v587, %v586
      %v671 = vpack.c.b16 %v589, %v588
      %v672 = vpack.c.b16 %v591, %v590
      %v673 = vpack.c.b16 %v593, %v592
      %v674 = vpack.c.b16 %v595, %v594
      %v675 = vpack.c.b16 %v597, %v596
      %v676 = vpack.c.b16 %v599, %v598
      %v677 = vpack.c.b16 %v601, %v600
      %v678 = vpack.c.b16 %v603, %v602
      %v679 = vpack.c.b16 %v605, %v604
      %v680 = vpack.c.b16 %v607, %v606
      %v681 = vpack.c.b16 %v609, %v608
      %v682 = vpack.c.b16 %v611, %v610
      %v683 = vpack.c.b16 %v613, %v612
      %v684 = vpack.c.b16 %v615, %v614
      %v685 = vpack.c.b16 %v617, %v616
      %v686 = vpack.c.b16 %v619, %v618
      %v687 = vpack.c.b16 %v621, %v620
      %v688 = vpack.c.b16 %v623, %v622
      %v689 = vpack.c.b16 %v625, %v624
      %754 = vmatprep.subr.bf16.mxu0 0
      %755 = vmatpush1.bf16.msra.mxu0 %v626
      %756 = vmatprep.subr.bf16.mxu0 0
      %757 = vmatpush1.bf16.msra.mxu0 %v627
      %758 = vmatprep.subr.bf16.mxu0 0
      %759 = vmatpush1.bf16.msra.mxu0 %v628
      %760 = vmatprep.subr.bf16.mxu0 0
      %761 = vmatpush1.bf16.msra.mxu0 %v629
      %762 = vmatprep.subr.bf16.mxu0 0
      %763 = vmatpush1.bf16.msra.mxu0 %v630
      %764 = vmatprep.subr.bf16.mxu0 0
      %765 = vmatpush1.bf16.msra.mxu0 %v631
      %766 = vmatprep.subr.bf16.mxu0 0
      %767 = vmatpush1.bf16.msra.mxu0 %v632
      %768 = vmatprep.subr.bf16.mxu0 0
      %769 = vmatpush1.bf16.msra.mxu0 %v633
      %770 = vmatprep.subr.bf16.mxu0 0
      %771 = vmatpush1.bf16.msra.mxu0 %v634
      %772 = vmatprep.subr.bf16.mxu0 0
      %773 = vmatpush1.bf16.msra.mxu0 %v635
      %774 = vmatprep.subr.bf16.mxu0 0
      %775 = vmatpush1.bf16.msra.mxu0 %v636
      %776 = vmatprep.subr.bf16.mxu0 0
      %777 = vmatpush1.bf16.msra.mxu0 %v637
      %778 = vmatprep.subr.bf16.mxu0 0
      %779 = vmatpush1.bf16.msra.mxu0 %v638
      %780 = vmatprep.subr.bf16.mxu0 0
      %781 = vmatpush1.bf16.msra.mxu0 %v639
      %782 = vmatprep.subr.bf16.mxu0 0
      %783 = vmatpush1.bf16.msra.mxu0 %v640
      %784 = vmatprep.subr.bf16.mxu0 0
      %785 = vmatpush1.bf16.msra.mxu0 %v641
      %786 = vmatprep.mubr.bf16.mxu0 %v228
      %787 = vmatmul.mubr.bf16.gmra.mrb[0].mxu0 %v227
      %v788 = vpop.f32.mrb[0].mxu0
      %v789 = vadd.f32 %v368, %v788
      %v790 = vpop.f32.mrb[0].mxu0
      %v791 = vpop.f32.mrb[0].mxu0
      %v792 = vadd.f32 %v368, %v791
      %v793 = vpop.f32.mrb[0].mxu0
      %794 = vdwg.mxu0
      %795 = vmatprep.subr.bf16.mxu0 0
      %796 = vmatpush1.bf16.msra.mxu0 %v642
      %797 = vmatprep.subr.bf16.mxu0 0
      %798 = vmatpush1.bf16.msra.mxu0 %v643
      %799 = vmatprep.subr.bf16.mxu0 0
      %800 = vmatpush1.bf16.msra.mxu0 %v644
      %801 = vmatprep.subr.bf16.mxu0 0
      %802 = vmatpush1.bf16.msra.mxu0 %v645
      %803 = vmatprep.subr.bf16.mxu0 0
      %804 = vmatpush1.bf16.msra.mxu0 %v646
      %805 = vmatprep.subr.bf16.mxu0 0
      %806 = vmatpush1.bf16.msra.mxu0 %v647
      %807 = vmatprep.subr.bf16.mxu0 0
      %808 = vmatpush1.bf16.msra.mxu0 %v648
      %809 = vmatprep.subr.bf16.mxu0 0
      %810 = vmatpush1.bf16.msra.mxu0 %v649
      %811 = vmatprep.subr.bf16.mxu0 0
      %812 = vmatpush1.bf16.msra.mxu0 %v650
      %813 = vmatprep.subr.bf16.mxu0 0
      %814 = vmatpush1.bf16.msra.mxu0 %v651
      %815 = vmatprep.subr.bf16.mxu0 0
      %816 = vmatpush1.bf16.msra.mxu0 %v652
      %817 = vmatprep.subr.bf16.mxu0 0
      %818 = vmatpush1.bf16.msra.mxu0 %v653
      %819 = vmatprep.subr.bf16.mxu0 0
      %820 = vmatpush1.bf16.msra.mxu0 %v654
      %821 = vmatprep.subr.bf16.mxu0 0
      %822 = vmatpush1.bf16.msra.mxu0 %v655
      %823 = vmatprep.subr.bf16.mxu0 0
      %824 = vmatpush1.bf16.msra.mxu0 %v656
      %825 = vmatprep.subr.bf16.mxu0 0
      %826 = vmatpush1.bf16.msra.mxu0 %v657
      %827 = vmatprep.mubr.bf16.mxu0 %v230
      %828 = vmatmul.mubr.bf16.gmra.mrb[0].mxu0 %v229
      %v829 = vpop.f32.mrb[0].mxu0
      %v830 = vadd.f32 %v789, %v829
      %v831 = vpop.f32.mrb[0].mxu0
      %v832 = vpop.f32.mrb[0].mxu0
      %v833 = vadd.f32 %v792, %v832
      %v834 = vpop.f32.mrb[0].mxu0
      %835 = vdwg.mxu0
      %836 = vmatprep.subr.bf16.mxu0 0
      %837 = vmatpush1.bf16.msra.mxu0 %v658
      %838 = vmatprep.subr.bf16.mxu0 0
      %839 = vmatpush1.bf16.msra.mxu0 %v659
      %840 = vmatprep.subr.bf16.mxu0 0
      %841 = vmatpush1.bf16.msra.mxu0 %v660
      %842 = vmatprep.subr.bf16.mxu0 0
      %843 = vmatpush1.bf16.msra.mxu0 %v661
      %844 = vmatprep.subr.bf16.mxu0 0
      %845 = vmatpush1.bf16.msra.mxu0 %v662
      %846 = vmatprep.subr.bf16.mxu0 0
      %847 = vmatpush1.bf16.msra.mxu0 %v663
      %848 = vmatprep.subr.bf16.mxu0 0
      %849 = vmatpush1.bf16.msra.mxu0 %v664
      %850 = vmatprep.subr.bf16.mxu0 0
      %851 = vmatpush1.bf16.msra.mxu0 %v665
      %852 = vmatprep.subr.bf16.mxu0 0
      %853 = vmatpush1.bf16.msra.mxu0 %v666
      %854 = vmatprep.subr.bf16.mxu0 0
      %855 = vmatpush1.bf16.msra.mxu0 %v667
      %856 = vmatprep.subr.bf16.mxu0 0
      %857 = vmatpush1.bf16.msra.mxu0 %v668
      %858 = vmatprep.subr.bf16.mxu0 0
      %859 = vmatpush1.bf16.msra.mxu0 %v669
      %860 = vmatprep.subr.bf16.mxu0 0
      %861 = vmatpush1.bf16.msra.mxu0 %v670
      %862 = vmatprep.subr.bf16.mxu0 0
      %863 = vmatpush1.bf16.msra.mxu0 %v671
      %864 = vmatprep.subr.bf16.mxu0 0
      %865 = vmatpush1.bf16.msra.mxu0 %v672
      %866 = vmatprep.subr.bf16.mxu0 0
      %867 = vmatpush1.bf16.msra.mxu0 %v673
      %868 = vmatprep.mubr.bf16.mxu0 %v232
      %869 = vmatmul.mubr.bf16.gmra.mrb[0].mxu0 %v231
      %v870 = vpop.f32.mrb[0].mxu0
      %v871 = vadd.f32 %v830, %v870
      %v872 = vpop.f32.mrb[0].mxu0
      %v873 = vpop.f32.mrb[0].mxu0
      %v874 = vadd.f32 %v833, %v873
      %v875 = vpop.f32.mrb[0].mxu0
      %876 = vdwg.mxu0
      %877 = vmatprep.subr.bf16.mxu0 0
      %878 = vmatpush1.bf16.msra.mxu0 %v674
      %879 = vmatprep.subr.bf16.mxu0 0
      %880 = vmatpush1.bf16.msra.mxu0 %v675
      %881 = vmatprep.subr.bf16.mxu0 0
      %882 = vmatpush1.bf16.msra.mxu0 %v676
      %883 = vmatprep.subr.bf16.mxu0 0
      %884 = vmatpush1.bf16.msra.mxu0 %v677
      %885 = vmatprep.subr.bf16.mxu0 0
      %886 = vmatpush1.bf16.msra.mxu0 %v678
      %887 = vmatprep.subr.bf16.mxu0 0
      %888 = vmatpush1.bf16.msra.mxu0 %v679
      %889 = vmatprep.subr.bf16.mxu0 0
      %890 = vmatpush1.bf16.msra.mxu0 %v680
      %891 = vmatprep.subr.bf16.mxu0 0
      %892 = vmatpush1.bf16.msra.mxu0 %v681
      %893 = vmatprep.subr.bf16.mxu0 0
      %894 = vmatpush1.bf16.msra.mxu0 %v682
      %895 = vmatprep.subr.bf16.mxu0 0
      %896 = vmatpush1.bf16.msra.mxu0 %v683
      %897 = vmatprep.subr.bf16.mxu0 0
      %898 = vmatpush1.bf16.msra.mxu0 %v684
      %899 = vmatprep.subr.bf16.mxu0 0
      %900 = vmatpush1.bf16.msra.mxu0 %v685
      %901 = vmatprep.subr.bf16.mxu0 0
      %902 = vmatpush1.bf16.msra.mxu0 %v686
      %903 = vmatprep.subr.bf16.mxu0 0
      %904 = vmatpush1.bf16.msra.mxu0 %v687
      %905 = vmatprep.subr.bf16.mxu0 0
      %906 = vmatpush1.bf16.msra.mxu0 %v688
      %907 = vmatprep.subr.bf16.mxu0 0
      %908 = vmatpush1.bf16.msra.mxu0 %v689
      %909 = vmatprep.mubr.bf16.mxu0 %v234
      %910 = vmatmul.mubr.bf16.gmra.mrb[0].mxu0 %v233
      %v911 = vpop.f32.mrb[0].mxu0
      %v912 = vadd.f32 %v871, %v911
      %v913 = vpop.f32.mrb[0].mxu0
      %v914 = vpop.f32.mrb[0].mxu0
      %v915 = vadd.f32 %v874, %v914
      %v916 = vpop.f32.mrb[0].mxu0
      %917 = vdwg.mxu0
      %v918 = vmax.f32 %v912, 0.0
      %v919 = vmax.f32 %v915, 0.0
      %920 = vxpose.xlu0.b32.start [1/16] %v918, 128
      %921 = vxpose.xlu0.b32.cont [2/16] %v919, 128
      %922 = vxpose.xlu0.b32.cont [3/16] 0.0, 128
      %923 = vxpose.xlu0.b32.cont [4/16] 0.0, 128
      %924 = vxpose.xlu0.b32.cont [5/16] 0.0, 128
      %925 = vxpose.xlu0.b32.cont [6/16] 0.0, 128
      %926 = vxpose.xlu0.b32.cont [7/16] 0.0, 128
      %927 = vxpose.xlu0.b32.cont [8/16] 0.0, 128
      %928 = vxpose.xlu0.b32.cont [9/16] 0.0, 128
      %929 = vxpose.xlu0.b32.cont [10/16] 0.0, 128
      %930 = vxpose.xlu0.b32.cont [11/16] 0.0, 128
      %931 = vxpose.xlu0.b32.cont [12/16] 0.0, 128
      %932 = vxpose.xlu0.b32.cont [13/16] 0.0, 128
      %933 = vxpose.xlu0.b32.cont [14/16] 0.0, 128
      %934 = vxpose.xlu0.b32.cont [15/16] 0.0, 128
      %935 = vxpose.xlu0.b32.end [16/16] 0.0, 128
      %v936 = vpop.trf.xlu0
      %v937 = vpop.trf.xlu0
      %v938 = vpop.trf.xlu0
      %v939 = vpop.trf.xlu0
      %v940 = vpop.trf.xlu0
      %v941 = vpop.trf.xlu0
      %v942 = vpop.trf.xlu0
      %v943 = vpop.trf.xlu0
      %v944 = vpop.trf.xlu0
      %v945 = vpop.trf.xlu0
      %v946 = vpop.trf.xlu0
      %v947 = vpop.trf.xlu0
      %v948 = vpop.trf.xlu0
      %v949 = vpop.trf.xlu0
      %v950 = vpop.trf.xlu0
      %v951 = vpop.trf.xlu0
      %v952 = vpack.c.bf16 %v937, %v936
      %v953 = vpack.c.bf16 %v939, %v938
      %v954 = vpack.c.bf16 %v941, %v940
      %v955 = vpack.c.bf16 %v943, %v942
      %v960 = vunpack.c.l.b16 %v952
      %v961 = vunpack.c.h.b16 %v952
      %v962 = vunpack.c.l.b16 %v953
      %v963 = vunpack.c.h.b16 %v953
      %v964 = vunpack.c.l.b16 %v954
      %v965 = vunpack.c.h.b16 %v954
      %v966 = vunpack.c.l.b16 %v955
      %v967 = vunpack.c.h.b16 %v955
      %v968 = vpack.c.b16 %v960, %v960
      %v969 = vpack.c.b16 %v961, %v961
      %v970 = vpack.c.b16 %v962, %v962
      %v971 = vpack.c.b16 %v963, %v963
      %v972 = vpack.c.b16 %v964, %v964
      %v973 = vpack.c.b16 %v965, %v965
      %v974 = vpack.c.b16 %v966, %v966
      %v975 = vpack.c.b16 %v967, %v967
      %vm984 = vcmask 125952
      %985 = vst.msk [vmem:[%s209] sm:$0xf] %vm984, %v968
      %986 = vst.msk [vmem:[%s209 + $0x4] sm:$0xf] %vm984, %v969
      %987 = vst.msk [vmem:[%s209 + $0x8] sm:$0xf] %vm984, %v970
      %988 = vst.msk [vmem:[%s209 + $0xc] sm:$0xf] %vm984, %v971
      %989 = vst.msk [vmem:[%s209 + $0x10] sm:$0xf] %vm984, %v972
      %990 = vst.msk [vmem:[%s209 + $0x14] sm:$0xf] %vm984, %v973
      %991 = vst.msk [vmem:[%s209 + $0x18] sm:$0xf] %vm984, %v974
      %992 = vst.msk [vmem:[%s209 + $0x1c] sm:$0xf] %vm984, %v975
      %p993 = scmp.lt.s32.totalorder %s18, 1
      %s994 = scalar_select %p993, %s18, 1
      %p995 = scmp.lt.s32.totalorder %s19, 0
      %s996 = scalar_select %p995, %s19, 0
      %s997 = smul.addr %s994, 8
      %s998 = sadd.s32 %s996, %s997
      %s999 = smul.addr %s998, 4
      %s1000 = scalar_lea.vmem %s3, %s999
      // Predicated region
      $region33: #{tpu_custom_call.1} parent=31 // pred_check
        %p1001 = pneg %p116
      $region34: #{tpu_custom_call.1} parent=31 // pred_check_branch
        %1003 = sbr.rel (%p1001) target = $region36
      $region35: #{tpu_custom_call.1} parent=31 // pred_region
        _
      $region36: #{tpu_custom_call.1} parent=31 // pred_fallthru
        _
    $region32: #{tpu_custom_call.1} parent=5 // pred_fallthru
      _
    %p1004 = scmp.le.s32.totalorder 2, %s9
    // Predicated region
    $region37: #{tpu_custom_call.1} parent=5 // pred_check
      %p1005 = pneg %p1004
    $region38: #{tpu_custom_call.1} parent=5 // pred_check_branch
      %1007 = sbr.rel (%p1005) target = $region40
    $region39: #{tpu_custom_call.1} parent=5 // pred_region
      %s1008 = ssub.s32 %s9, 2
      // Predicated region
      $region41: #{tpu_custom_call.1} parent=39 // pred_check
        %p1009 = pneg %p122
      $region42: #{tpu_custom_call.1} parent=39 // pred_check_branch
        %1011 = sbr.rel (%p1009) target = $region44
      $region43: #{tpu_custom_call.1} parent=39 // pred_region
        %p1012 = scmp.lt.s32.totalorder %s20, 1
        %s1013 = scalar_select %p1012, %s20, 1
        %p1014 = scmp.lt.s32.totalorder %s21, 0
        %s1015 = scalar_select %p1014, %s21, 0
        %s1016 = smul.addr %s1013, 8
        %s1017 = sadd.s32 %s1015, %s1016
        %s1018 = smul.addr %s1017, 4
        %s1019 = scalar_lea.vmem %s3, %s1018
      $region44: #{tpu_custom_call.1} parent=39 // pred_fallthru
        _
    $region40: #{tpu_custom_call.1} parent=5 // pred_fallthru
      _
  $region6: #{tpu_custom_call.1} parent=0 // loop_footer
    %s13 = sadd.s32 1, %s9
  $region7: #{tpu_custom_call.1} parent=0 // loop_footer_branch
    %8 = sbr.rel target = $region3
  $region8: #{tpu_custom_call.1} parent=0 // loop_exit
    _

</llo_original>
